<compile_context>
chip_gen: v7x
topology: tpu7x:2x2x1
jax: 0.10.0
libtpu: 0.0.40
codegen_flags: <defaults>
</compile_context>

<pallas_src>
import functools
from typing import NamedTuple

import jax
import jax.numpy as jnp
from jax.experimental import pallas as pl
from jax.experimental.pallas import tpu as pltpu


def _round_up(x, m):
    return ((x + m - 1) // m) * m


def _pad2(a, rows, cols):
    return jnp.pad(a, ((0, rows - a.shape[0]), (0, cols - a.shape[1])))


class MLPParams(NamedTuple):
    alpha: jax.Array     # (4,) f32 PReLU slopes (lives in SMEM)
    w1: jax.Array
    b1: jax.Array
    w2: jax.Array
    b2: jax.Array
    w3: jax.Array
    b3: jax.Array
    w4: jax.Array
    b4: jax.Array
    w5: jax.Array
    b5: jax.Array


def mlp_kernel(alpha_ref,                       # SMEM: (4,) PReLU slopes (f32)
               x_ref,                           # VMEM: (bm, input_size) bf16
               w1_ref, b1_ref, w2_ref, b2_ref,  # VMEM: weights bf16, biases epi_dtype
               w3_ref, b3_ref, w4_ref, b4_ref,
               w5_ref, b5_ref,                  # b5 is f32
               out_ref,                         # VMEM: (bm, out_padded) bf16
               *, epi_dtype):
    # Read all PReLU slopes from SMEM once at kernel entry (scalar casts are free).
    a1 = alpha_ref[0].astype(epi_dtype)
    a2 = alpha_ref[1].astype(epi_dtype)
    a3 = alpha_ref[2].astype(epi_dtype)
    a4 = alpha_ref[3].astype(epi_dtype)

    def prelu(h, a):
        # PReLU(num_parameters=1): x if x >= 0 else a*x.
        # (jnp.maximum(h, a*h) would save one VALU op but is only valid for 0 <= a <= 1;
        #  a is a learned parameter, so keep the exact form.)
        return jnp.where(h >= 0, h, a * h)

    def layer(h, w_ref, b_ref, a):
        # bf16 operands on the MXU with f32 accumulation; the bias+PReLU epilogue runs in
        # epi_dtype (bf16 on v6e/v7x where the VPU has a native bf16 path, f32 on v5e).
        z = jnp.dot(h, w_ref[...], preferred_element_type=jnp.float32)
        z = z.astype(epi_dtype) + b_ref[...]
        return prelu(z, a).astype(jnp.bfloat16)

    h = layer(x_ref[...], w1_ref, b1_ref, a1)   # Linear(in,512)+PReLU; Dropout -> identity
    h = layer(h, w2_ref, b2_ref, a2)            # Linear(512,256)+PReLU; Dropout -> identity
    h = layer(h, w3_ref, b3_ref, a3)            # Linear(256,128)+PReLU; Dropout -> identity
    h = layer(h, w4_ref, b4_ref, a4)            # Linear(128,64->pad128)+PReLU
    z = jnp.dot(h, w5_ref[...], preferred_element_type=jnp.float32) + b5_ref[...]
    out_ref[...] = z.astype(out_ref.dtype)      # bf16, lane-dense store


def init_mlp_params(key, input_size, output_size, dtype=jnp.float32):
    """Deterministic init mimicking torch.nn.Linear defaults (uniform +/- 1/sqrt(fan_in))."""
    sizes = [(input_size, 512), (512, 256), (256, 128), (128, 64), (64, output_size)]
    params = {}
    keys = jax.random.split(key, 2 * len(sizes))
    for i, (fan_in, fan_out) in enumerate(sizes):
        bound = 1.0 / jnp.sqrt(jnp.float32(fan_in))
        # store already transposed: (in, out)
        w = jax.random.uniform(keys[2 * i], (fan_in, fan_out), dtype, -bound, bound)
        b = jax.random.uniform(keys[2 * i + 1], (1, fan_out), dtype, -bound, bound)
        params[f"w{i + 1}"] = w
        params[f"b{i + 1}"] = b
    # PReLU slopes, one scalar per PReLU layer, PyTorch default init = 0.25
    params["alpha"] = jnp.full((4,), 0.25, dtype=jnp.float32)
    return params


def default_epilogue_dtype():
    """bf16 epilogue on chips with a bf16 VPU (v6e/v7x); f32 on v5e and older."""
    try:
        kind = jax.devices()[0].device_kind.lower()
    except Exception:
        return jnp.bfloat16
    for old in ("v2", "v3", "v4", "v5"):
        if old in kind:
            return jnp.float32
    return jnp.bfloat16


def prepare_params(params, epilogue_dtype=jnp.bfloat16):
    """One-time pad + cast of the parameters (keep this OFF the per-call hot path).

    Pads the narrow tail (hidden 64 -> 128, out 8 -> 128) so the last two matmuls use
    full MXU columns and the output store is lane-dense (no masked vst).
    """
    bf = jnp.bfloat16
    ed = epilogue_dtype
    h4_p = _round_up(params["w4"].shape[1], 128)
    out_p = _round_up(params["w5"].shape[1], 128)
    return MLPParams(
        alpha=params["alpha"].astype(jnp.float32),
        w1=params["w1"].astype(bf), b1=params["b1"].astype(ed),
        w2=params["w2"].astype(bf), b2=params["b2"].astype(ed),
        w3=params["w3"].astype(bf), b3=params["b3"].astype(ed),
        w4=_pad2(params["w4"], params["w4"].shape[0], h4_p).astype(bf),
        b4=_pad2(params["b4"], 1, h4_p).astype(ed),
        w5=_pad2(params["w5"], h4_p, out_p).astype(bf),
        b5=_pad2(params["b5"], 1, out_p).astype(jnp.float32),   # final bias add stays f32
    )


@functools.partial(jax.jit, static_argnames=("out_features", "block_m", "epilogue_dtype"))
def mlp_forward(x, prep: MLPParams, *, out_features, block_m=512,
                epilogue_dtype=jnp.bfloat16):
    B, input_size = x.shape
    h4_p = prep.w4.shape[1]
    out_p = prep.w5.shape[1]

    # ---- batch tiling ----
    # For B >= 32, guarantee at least 2 grid steps (both v7x TensorCores busy via the
    # "parallel" batch axis); block_m caps the tile so very large batches stream.
    if B >= 32:
        bm = min(block_m, _round_up(-(-B // 2), 16))
    else:
        bm = _round_up(max(B, 1), 16)          # bf16 packs 16 sublanes per vreg
    B_p = _round_up(B, bm)
    xp = x if B_p == B else jnp.pad(x, ((0, B_p - B), (0, 0)))
    xp = xp.astype(jnp.bfloat16)
    n_steps = B_p // bm

    full = lambda arr: pl.BlockSpec(arr.shape, lambda i, _nd=arr.ndim: (0,) * _nd)

    grid_spec = pltpu.PrefetchScalarGridSpec(
        num_scalar_prefetch=0,
        grid=(n_steps,),
        in_specs=[
            pl.BlockSpec(memory_space=pltpu.MemorySpace.SMEM),   # alpha (4,) f32
            pl.BlockSpec((bm, input_size), lambda i: (i, 0)),    # x tile
            full(prep.w1), full(prep.b1),
            full(prep.w2), full(prep.b2),
            full(prep.w3), full(prep.b3),
            full(prep.w4), full(prep.b4),
            full(prep.w5), full(prep.b5),
        ],
        out_specs=pl.BlockSpec((bm, out_p), lambda i: (i, 0)),
    )

    # Advisory cost estimate: helps XLA schedule the surrounding pad/cast/slice ops,
    # which matters most in the tiny-batch latency regime.
    flops = 2 * B_p * (input_size * 512 + 512 * 256 + 256 * 128
                       + 128 * h4_p + h4_p * out_p)
    weight_bytes = sum(int(a.size) * a.dtype.itemsize for a in prep)
    bytes_accessed = int(xp.size) * 2 + weight_bytes + B_p * out_p * 2
    cost = pl.CostEstimate(flops=flops, transcendentals=0, bytes_accessed=bytes_accessed)

    out = pl.pallas_call(
        functools.partial(mlp_kernel, epi_dtype=epilogue_dtype),
        out_shape=jax.ShapeDtypeStruct((B_p, out_p), jnp.bfloat16),
        grid_spec=grid_spec,
        compiler_params=pltpu.CompilerParams(
            dimension_semantics=("parallel",)),
        cost_estimate=cost,
    )(prep.alpha, xp,
      prep.w1, prep.b1, prep.w2, prep.b2,
      prep.w3, prep.b3, prep.w4, prep.b4,
      prep.w5, prep.b5)

    return out[:B, :out_features].astype(x.dtype)


def mlp_reference(x, params, epilogue_dtype=jnp.bfloat16):
    """Pure-JAX reference mirroring the kernel numerics (bf16 MXU, epi_dtype epilogue)."""
    bf = jnp.bfloat16
    ed = epilogue_dtype

    def prelu(h, a):
        return jnp.where(h >= 0, h, a.astype(h.dtype) * h)

    def dot(a, b):
        return jnp.dot(a.astype(bf), b.astype(bf), preferred_element_type=jnp.float32)

    al = params["alpha"]
    h = x
    h = prelu(dot(h, params["w1"]).astype(ed) + params["b1"].astype(ed), al[0])
    h = prelu(dot(h, params["w2"]).astype(ed) + params["b2"].astype(ed), al[1])
    h = prelu(dot(h, params["w3"]).astype(ed) + params["b3"].astype(ed), al[2])
    h = prelu(dot(h, params["w4"]).astype(ed) + params["b4"].astype(ed), al[3])
    h = dot(h, params["w5"]) + params["b5"].astype(jnp.float32)
    return h.astype(jnp.bfloat16).astype(x.dtype)


def mlp_reference_f32(x, params):
    """Full-f32 reference (PyTorch-equivalent numerics) for a loose sanity check."""
    def prelu(h, a):
        return jnp.where(h >= 0, h, a * h)
    al = params["alpha"]
    h = x.astype(jnp.float32)
    h = prelu(h @ params["w1"] + params["b1"], al[0])
    h = prelu(h @ params["w2"] + params["b2"], al[1])
    h = prelu(h @ params["w3"] + params["b3"], al[2])
    h = prelu(h @ params["w4"] + params["b4"], al[3])
    h = h @ params["w5"] + params["b5"]
    return h.astype(x.dtype)


if __name__ == "__main__":
    key = jax.random.PRNGKey(0)
    k_param, k_x1, k_x2 = jax.random.split(key, 3)

    input_size = 32     # e.g. pos/vel feature vector
    output_size = 8

    params = init_mlp_params(k_param, input_size, output_size)
    epi = default_epilogue_dtype()
    prep = prepare_params(params, epilogue_dtype=epi)   # one-time pad + cast

    # batch=8  -> tiny-batch single-step path; batch=50 -> padded, 2-step "parallel" grid.
    for batch, kx in ((8, k_x1), (50, k_x2)):
        x = jax.random.normal(kx, (batch, input_size), dtype=jnp.float32)
        out = jax.block_until_ready(
            mlp_forward(x, prep, out_features=output_size, epilogue_dtype=epi))
        assert out.shape == (batch, output_size)

        ref = mlp_reference(x, params, epilogue_dtype=epi)
        assert jnp.allclose(out, ref, atol=2e-2, rtol=2e-2), "mismatch vs mirrored reference"

        ref32 = mlp_reference_f32(x, params)
        assert jnp.allclose(out, ref32, atol=1e-1, rtol=1e-1), "mismatch vs f32 reference"

    print("KERNEL_OK")
</pallas_src>

<mosaic_0001>
module attributes {stable_mosaic.version = 11 : i64} {
  func.func @mlp_kernel(%arg0: i32, %arg1: memref<4xf32, #tpu.memory_space<smem>>, %arg2: memref<16x32xbf16, #tpu.memory_space<vmem>>, %arg3: memref<32x512xbf16, #tpu.memory_space<vmem>>, %arg4: memref<1x512xbf16, #tpu.memory_space<vmem>>, %arg5: memref<512x256xbf16, #tpu.memory_space<vmem>>, %arg6: memref<1x256xbf16, #tpu.memory_space<vmem>>, %arg7: memref<256x128xbf16, #tpu.memory_space<vmem>>, %arg8: memref<1x128xbf16, #tpu.memory_space<vmem>>, %arg9: memref<128x128xbf16, #tpu.memory_space<vmem>>, %arg10: memref<1x128xbf16, #tpu.memory_space<vmem>>, %arg11: memref<128x128xbf16, #tpu.memory_space<vmem>>, %arg12: memref<1x128xf32, #tpu.memory_space<vmem>>, %arg13: memref<16x128xbf16, #tpu.memory_space<vmem>>) attributes {dimension_semantics = [#tpu.dimension_semantics<parallel>], iteration_bounds = array<i64: 1>, scalar_prefetch = 0 : i64, scratch_operands = 0 : i64, tpu.core_type = #tpu.core_type<tc>, window_params = [{transform_indices = @transform_0, window_bounds = array<i64: 4>}, {transform_indices = @transform_1, window_bounds = array<i64: 16, 32>}, {pipeline_mode = #tpu.pipeline_mode<synchronous>, transform_indices = @transform_2, window_bounds = array<i64: 32, 512>}, {pipeline_mode = #tpu.pipeline_mode<synchronous>, transform_indices = @transform_3, window_bounds = array<i64: 1, 512>}, {pipeline_mode = #tpu.pipeline_mode<synchronous>, transform_indices = @transform_4, window_bounds = array<i64: 512, 256>}, {pipeline_mode = #tpu.pipeline_mode<synchronous>, transform_indices = @transform_5, window_bounds = array<i64: 1, 256>}, {pipeline_mode = #tpu.pipeline_mode<synchronous>, transform_indices = @transform_6, window_bounds = array<i64: 256, 128>}, {pipeline_mode = #tpu.pipeline_mode<synchronous>, transform_indices = @transform_7, window_bounds = array<i64: 1, 128>}, {pipeline_mode = #tpu.pipeline_mode<synchronous>, transform_indices = @transform_8, window_bounds = array<i64: 128, 128>}, {pipeline_mode = #tpu.pipeline_mode<synchronous>, transform_indices = @transform_9, window_bounds = array<i64: 1, 128>}, {pipeline_mode = #tpu.pipeline_mode<synchronous>, transform_indices = @transform_10, window_bounds = array<i64: 128, 128>}, {pipeline_mode = #tpu.pipeline_mode<synchronous>, transform_indices = @transform_11, window_bounds = array<i64: 1, 128>}, {transform_indices = @transform_12, window_bounds = array<i64: 16, 128>}]} {
    %c0 = arith.constant 0 : index
    %0 = memref.load %arg1[%c0] : memref<4xf32, #tpu.memory_space<smem>>
    %1 = arith.truncf %0 : f32 to bf16
    %c1 = arith.constant 1 : index
    %2 = memref.load %arg1[%c1] : memref<4xf32, #tpu.memory_space<smem>>
    %3 = arith.truncf %2 : f32 to bf16
    %c2 = arith.constant 2 : index
    %4 = memref.load %arg1[%c2] : memref<4xf32, #tpu.memory_space<smem>>
    %5 = arith.truncf %4 : f32 to bf16
    %c3 = arith.constant 3 : index
    %6 = memref.load %arg1[%c3] : memref<4xf32, #tpu.memory_space<smem>>
    %7 = arith.truncf %6 : f32 to bf16
    %c0_0 = arith.constant 0 : index
    %c0_1 = arith.constant 0 : index
    %8 = vector.load %arg2[%c0_0, %c0_1] : memref<16x32xbf16, #tpu.memory_space<vmem>>, vector<16x32xbf16>
    %c0_2 = arith.constant 0 : index
    %c0_3 = arith.constant 0 : index
    %9 = vector.load %arg3[%c0_2, %c0_3] : memref<32x512xbf16, #tpu.memory_space<vmem>>, vector<32x512xbf16>
    %cst = arith.constant dense<0.000000e+00> : vector<16x512xf32>
    %10 = tpu.matmul %8, %9, %cst {dimension_numbers = #tpu.dot_dimension_numbers<[1], [0], [0], [1], [0, 0, 1, 1], [], []>} : vector<16x32xbf16>, vector<32x512xbf16>, vector<16x512xf32> -> vector<16x512xf32>
    %11 = arith.truncf %10 : vector<16x512xf32> to vector<16x512xbf16>
    %c0_4 = arith.constant 0 : index
    %c0_5 = arith.constant 0 : index
    %12 = vector.load %arg4[%c0_4, %c0_5] : memref<1x512xbf16, #tpu.memory_space<vmem>>, vector<1x512xbf16>
    %13 = vector.broadcast %12 : vector<1x512xbf16> to vector<16x512xbf16>
    %14 = arith.addf %11, %13 : vector<16x512xbf16>
    %cst_6 = arith.constant 0.000000e+00 : bf16
    %15 = vector.broadcast %cst_6 : bf16 to vector<16x512xbf16>
    %16 = arith.cmpf oge, %14, %15 : vector<16x512xbf16>
    %17 = vector.broadcast %1 : bf16 to vector<16x512xbf16>
    %18 = arith.mulf %17, %14 : vector<16x512xbf16>
    %19 = arith.select %16, %14, %18 : vector<16x512xi1>, vector<16x512xbf16>
    %c0_7 = arith.constant 0 : index
    %c0_8 = arith.constant 0 : index
    %20 = vector.load %arg5[%c0_7, %c0_8] : memref<512x256xbf16, #tpu.memory_space<vmem>>, vector<512x256xbf16>
    %cst_9 = arith.constant dense<0.000000e+00> : vector<16x256xf32>
    %21 = tpu.matmul %19, %20, %cst_9 {dimension_numbers = #tpu.dot_dimension_numbers<[1], [0], [0], [1], [0, 0, 1, 1], [], []>} : vector<16x512xbf16>, vector<512x256xbf16>, vector<16x256xf32> -> vector<16x256xf32>
    %22 = arith.truncf %21 : vector<16x256xf32> to vector<16x256xbf16>
    %c0_10 = arith.constant 0 : index
    %c0_11 = arith.constant 0 : index
    %23 = vector.load %arg6[%c0_10, %c0_11] : memref<1x256xbf16, #tpu.memory_space<vmem>>, vector<1x256xbf16>
    %24 = vector.broadcast %23 : vector<1x256xbf16> to vector<16x256xbf16>
    %25 = arith.addf %22, %24 : vector<16x256xbf16>
    %cst_12 = arith.constant 0.000000e+00 : bf16
    %26 = vector.broadcast %cst_12 : bf16 to vector<16x256xbf16>
    %27 = arith.cmpf oge, %25, %26 : vector<16x256xbf16>
    %28 = vector.broadcast %3 : bf16 to vector<16x256xbf16>
    %29 = arith.mulf %28, %25 : vector<16x256xbf16>
    %30 = arith.select %27, %25, %29 : vector<16x256xi1>, vector<16x256xbf16>
    %c0_13 = arith.constant 0 : index
    %c0_14 = arith.constant 0 : index
    %31 = vector.load %arg7[%c0_13, %c0_14] : memref<256x128xbf16, #tpu.memory_space<vmem>>, vector<256x128xbf16>
    %cst_15 = arith.constant dense<0.000000e+00> : vector<16x128xf32>
    %32 = tpu.matmul %30, %31, %cst_15 {dimension_numbers = #tpu.dot_dimension_numbers<[1], [0], [0], [1], [0, 0, 1, 1], [], []>} : vector<16x256xbf16>, vector<256x128xbf16>, vector<16x128xf32> -> vector<16x128xf32>
    %33 = arith.truncf %32 : vector<16x128xf32> to vector<16x128xbf16>
    %c0_16 = arith.constant 0 : index
    %c0_17 = arith.constant 0 : index
    %34 = vector.load %arg8[%c0_16, %c0_17] : memref<1x128xbf16, #tpu.memory_space<vmem>>, vector<1x128xbf16>
    %35 = vector.broadcast %34 : vector<1x128xbf16> to vector<16x128xbf16>
    %36 = arith.addf %33, %35 : vector<16x128xbf16>
    %cst_18 = arith.constant 0.000000e+00 : bf16
    %37 = vector.broadcast %cst_18 : bf16 to vector<16x128xbf16>
    %38 = arith.cmpf oge, %36, %37 : vector<16x128xbf16>
    %39 = vector.broadcast %5 : bf16 to vector<16x128xbf16>
    %40 = arith.mulf %39, %36 : vector<16x128xbf16>
    %41 = arith.select %38, %36, %40 : vector<16x128xi1>, vector<16x128xbf16>
    %c0_19 = arith.constant 0 : index
    %c0_20 = arith.constant 0 : index
    %42 = vector.load %arg9[%c0_19, %c0_20] : memref<128x128xbf16, #tpu.memory_space<vmem>>, vector<128x128xbf16>
    %cst_21 = arith.constant dense<0.000000e+00> : vector<16x128xf32>
    %43 = tpu.matmul %41, %42, %cst_21 {dimension_numbers = #tpu.dot_dimension_numbers<[1], [0], [0], [1], [0, 0, 1, 1], [], []>} : vector<16x128xbf16>, vector<128x128xbf16>, vector<16x128xf32> -> vector<16x128xf32>
    %44 = arith.truncf %43 : vector<16x128xf32> to vector<16x128xbf16>
    %c0_22 = arith.constant 0 : index
    %c0_23 = arith.constant 0 : index
    %45 = vector.load %arg10[%c0_22, %c0_23] : memref<1x128xbf16, #tpu.memory_space<vmem>>, vector<1x128xbf16>
    %46 = vector.broadcast %45 : vector<1x128xbf16> to vector<16x128xbf16>
    %47 = arith.addf %44, %46 : vector<16x128xbf16>
    %cst_24 = arith.constant 0.000000e+00 : bf16
    %48 = vector.broadcast %cst_24 : bf16 to vector<16x128xbf16>
    %49 = arith.cmpf oge, %47, %48 : vector<16x128xbf16>
    %50 = vector.broadcast %7 : bf16 to vector<16x128xbf16>
    %51 = arith.mulf %50, %47 : vector<16x128xbf16>
    %52 = arith.select %49, %47, %51 : vector<16x128xi1>, vector<16x128xbf16>
    %c0_25 = arith.constant 0 : index
    %c0_26 = arith.constant 0 : index
    %53 = vector.load %arg11[%c0_25, %c0_26] : memref<128x128xbf16, #tpu.memory_space<vmem>>, vector<128x128xbf16>
    %cst_27 = arith.constant dense<0.000000e+00> : vector<16x128xf32>
    %54 = tpu.matmul %52, %53, %cst_27 {dimension_numbers = #tpu.dot_dimension_numbers<[1], [0], [0], [1], [0, 0, 1, 1], [], []>} : vector<16x128xbf16>, vector<128x128xbf16>, vector<16x128xf32> -> vector<16x128xf32>
    %c0_28 = arith.constant 0 : index
    %c0_29 = arith.constant 0 : index
    %55 = vector.load %arg12[%c0_28, %c0_29] : memref<1x128xf32, #tpu.memory_space<vmem>>, vector<1x128xf32>
    %56 = vector.broadcast %55 : vector<1x128xf32> to vector<16x128xf32>
    %57 = arith.addf %54, %56 : vector<16x128xf32>
    %58 = arith.truncf %57 : vector<16x128xf32> to vector<16x128xbf16>
    %c0_30 = arith.constant 0 : index
    %c0_31 = arith.constant 0 : index
    %59 = vector.load %arg13[%c0_30, %c0_31] : memref<16x128xbf16, #tpu.memory_space<vmem>>, vector<16x128xbf16>
    tpu.vector_store %arg13[%c0_30, %c0_31], %58 {strides = array<i32>} : memref<16x128xbf16, #tpu.memory_space<vmem>>, vector<16x128xbf16>,
    return
  }
  func.func @transform_0(%arg0: i32) -> i32 {
    %c0_i32 = arith.constant 0 : i32
    %c0_i32_0 = arith.constant 0 : i32
    return %c0_i32 : i32
  }
  func.func @transform_1(%arg0: i32) -> (i32, i32) {
    %c0_i32 = arith.constant 0 : i32
    %c0_i32_0 = arith.constant 0 : i32
    return %arg0, %c0_i32 : i32, i32
  }
  func.func @transform_2(%arg0: i32) -> (i32, i32) {
    %c0_i32 = arith.constant 0 : i32
    %c0_i32_0 = arith.constant 0 : i32
    %c0_i32_1 = arith.constant 0 : i32
    return %c0_i32, %c0_i32_0 : i32, i32
  }
  func.func @transform_3(%arg0: i32) -> (i32, i32) {
    %c0_i32 = arith.constant 0 : i32
    %c0_i32_0 = arith.constant 0 : i32
    %c0_i32_1 = arith.constant 0 : i32
    return %c0_i32, %c0_i32_0 : i32, i32
  }
  func.func @transform_4(%arg0: i32) -> (i32, i32) {
    %c0_i32 = arith.constant 0 : i32
    %c0_i32_0 = arith.constant 0 : i32
    %c0_i32_1 = arith.constant 0 : i32
    return %c0_i32, %c0_i32_0 : i32, i32
  }
  func.func @transform_5(%arg0: i32) -> (i32, i32) {
    %c0_i32 = arith.constant 0 : i32
    %c0_i32_0 = arith.constant 0 : i32
    %c0_i32_1 = arith.constant 0 : i32
    return %c0_i32, %c0_i32_0 : i32, i32
  }
  func.func @transform_6(%arg0: i32) -> (i32, i32) {
    %c0_i32 = arith.constant 0 : i32
    %c0_i32_0 = arith.constant 0 : i32
    %c0_i32_1 = arith.constant 0 : i32
    return %c0_i32, %c0_i32_0 : i32, i32
  }
  func.func @transform_7(%arg0: i32) -> (i32, i32) {
    %c0_i32 = arith.constant 0 : i32
    %c0_i32_0 = arith.constant 0 : i32
    %c0_i32_1 = arith.constant 0 : i32
    return %c0_i32, %c0_i32_0 : i32, i32
  }
  func.func @transform_8(%arg0: i32) -> (i32, i32) {
    %c0_i32 = arith.constant 0 : i32
    %c0_i32_0 = arith.constant 0 : i32
    %c0_i32_1 = arith.constant 0 : i32
    return %c0_i32, %c0_i32_0 : i32, i32
  }
  func.func @transform_9(%arg0: i32) -> (i32, i32) {
    %c0_i32 = arith.constant 0 : i32
    %c0_i32_0 = arith.constant 0 : i32
    %c0_i32_1 = arith.constant 0 : i32
    return %c0_i32, %c0_i32_0 : i32, i32
  }
  func.func @transform_10(%arg0: i32) -> (i32, i32) {
    %c0_i32 = arith.constant 0 : i32
    %c0_i32_0 = arith.constant 0 : i32
    %c0_i32_1 = arith.constant 0 : i32
    return %c0_i32, %c0_i32_0 : i32, i32
  }
  func.func @transform_11(%arg0: i32) -> (i32, i32) {
    %c0_i32 = arith.constant 0 : i32
    %c0_i32_0 = arith.constant 0 : i32
    %c0_i32_1 = arith.constant 0 : i32
    return %c0_i32, %c0_i32_0 : i32, i32
  }
  func.func @transform_12(%arg0: i32) -> (i32, i32) {
    %c0_i32 = arith.constant 0 : i32
    %c0_i32_0 = arith.constant 0 : i32
    return %arg0, %c0_i32 : i32, i32
  }
}

</mosaic_0001>

<llo_original>
// kernel: mlp_forward.1
$region0: #{mlp_forward.1}
  #allocation0 [shape = 'u32[]', space=smem, size = 0x4, offset = 0x4, fixed_abs, tag = 'smem constant byte address 0x4 - core index']
  #allocation1 [shape = 'u32[144,128]{1,0:T(1,128)}', space=vmem, size = 0x12000, scoped, tag = 'internal scratch']
  %s0 = inlined_call_operand.vmem [shape: f32[4], index: 0, kind: input, shape index: {}]
  %s1 = inlined_call_operand.vmem [shape: bf16[16,32], index: 1, kind: input, shape index: {}]
  %s2 = inlined_call_operand.hbm [shape: bf16[32,512], index: 2, kind: input, shape index: {}]
  %s3 = inlined_call_operand.vmem [shape: bf16[1,512], index: 3, kind: input, shape index: {}]
  %s4 = inlined_call_operand.hbm [shape: bf16[512,256], index: 4, kind: input, shape index: {}]
  %s5 = inlined_call_operand.vmem [shape: bf16[1,256], index: 5, kind: input, shape index: {}]
  %s6 = inlined_call_operand.hbm [shape: bf16[256,128], index: 6, kind: input, shape index: {}]
  %s7 = inlined_call_operand.vmem [shape: bf16[1,128], index: 7, kind: input, shape index: {}]
  %s8 = inlined_call_operand.hbm [shape: bf16[128,128], index: 8, kind: input, shape index: {}]
  %s9 = inlined_call_operand.vmem [shape: bf16[1,128], index: 9, kind: input, shape index: {}]
  %s10 = inlined_call_operand.hbm [shape: bf16[128,128], index: 10, kind: input, shape index: {}]
  %s11 = inlined_call_operand.vmem [shape: f32[1,128], index: 11, kind: input, shape index: {}]
  %s12 = inlined_call_operand.vmem [shape: bf16[16,128], index: 12, kind: output, shape index: {}]
  %s13 = sld [smem:[#allocation0]]
  $region82: #{mlp_forward.1} parent=0
    _
  %s15 = ssub.s32 1, %s13
  %s16 = scalar_select 0, %s15, %s13
  $region1: #{mlp_forward.1} parent=0
    #allocation2 [shape = 'u8[512]{0}', space=smem, size = 0x200, scoped, tag = 'input window, operand 0, single buffered']
    #allocation3 [shape = 's32[1]{0}', space=sflag, size = 0x4, scoped, tag = 'scoped memory for mlp_forward.1']
    #allocation4 [shape = 's32[1]{0}', space=sflag, size = 0x4, scoped, tag = 'scoped memory for mlp_forward.1']
    #allocation5 [shape = 'u8[32768]{0}', space=vmem, size = 0x8000, scoped, tag = 'input window, operand 2, single buffered']
    #allocation6 [shape = 'u8[262144]{0}', space=vmem, size = 0x40000, scoped, tag = 'input window, operand 4, single buffered']
    #allocation7 [shape = 's32[1]{0}', space=sflag, size = 0x4, scoped, tag = 'scoped memory for mlp_forward.1']
    #allocation8 [shape = 'u8[65536]{0}', space=vmem, size = 0x10000, scoped, tag = 'input window, operand 6, single buffered']
    #allocation9 [shape = 'u8[32768]{0}', space=vmem, size = 0x8000, scoped, tag = 'input window, operand 8, single buffered']
    #allocation10 [shape = 's32[1]{0}', space=sflag, size = 0x4, scoped, tag = 'scoped memory for mlp_forward.1']
    #allocation11 [shape = 'u8[32768]{0}', space=vmem, size = 0x8000, scoped, tag = 'input window, operand 10, single buffered']
    %17 = vsyncpa [#allocation4], 0
    %18 = vsyncpa [#allocation3], 0
    %19 = vsyncpa [#allocation7], 0
    %20 = vsyncpa [#allocation10], 0
    // Predicated region
    $region2: #{mlp_forward.1} parent=1 // pred_check
      _
    $region3: #{mlp_forward.1} parent=1 // pred_check_branch
      %22 = sbr.rel (0) target = $region5
    $region4: #{mlp_forward.1} parent=1 // pred_region
      %s24 = ssub.s32 16, 16
      %25 = vsyncadd [#allocation4], %s24
      %s27 = sshll.u32 %s0, 4
      %s28 = int_to_ptr.vmem [resolvable:$true] %s27
      %30 = dma.vmem_to_smem %s28, 16, [#allocation2], [#allocation4]
    $region5: #{mlp_forward.1} parent=1 // pred_fallthru
      _
    // Predicated region
    $region6: #{mlp_forward.1} parent=1 // pred_check
      _
    $region7: #{mlp_forward.1} parent=1 // pred_check_branch
      %32 = sbr.rel (0) target = $region9
    $region8: #{mlp_forward.1} parent=1 // pred_region
      _
    $region9: #{mlp_forward.1} parent=1 // pred_fallthru
      _
    // Predicated region
    $region10: #{mlp_forward.1} parent=1 // pred_check
      _
    $region11: #{mlp_forward.1} parent=1 // pred_check_branch
      %34 = sbr.rel (0) target = $region13
    $region12: #{mlp_forward.1} parent=1 // pred_region
      %s36 = ssub.s32 1024, 1024
      %37 = vsyncadd [#allocation3], %s36
      %s38 = sshll.u32 [#allocation5], 4
      %s39 = int_to_ptr.vmem [resolvable:$true] %s38
      %44 = dma.hbm_to_vmem [thread:$0]  %s2, 1024, %s39, [#allocation3], 256, 256, 16
    $region13: #{mlp_forward.1} parent=1 // pred_fallthru
      _
    // Predicated region
    $region14: #{mlp_forward.1} parent=1 // pred_check
      _
    $region15: #{mlp_forward.1} parent=1 // pred_check_branch
      %46 = sbr.rel (0) target = $region17
    $region16: #{mlp_forward.1} parent=1 // pred_region
      _
    $region17: #{mlp_forward.1} parent=1 // pred_fallthru
      _
    // Predicated region
    $region18: #{mlp_forward.1} parent=1 // pred_check
      _
    $region19: #{mlp_forward.1} parent=1 // pred_check_branch
      %48 = sbr.rel (0) target = $region21
    $region20: #{mlp_forward.1} parent=1 // pred_region
      %s50 = ssub.s32 8192, 8192
      %51 = vsyncadd [#allocation7], %s50
      %s52 = sshll.u32 [#allocation6], 4
      %s53 = int_to_ptr.vmem [resolvable:$true] %s52
      %58 = dma.hbm_to_vmem [thread:$0]  %s4, 8192, %s53, [#allocation7], 128, 128, 8
    $region21: #{mlp_forward.1} parent=1 // pred_fallthru
      _
    // Predicated region
    $region22: #{mlp_forward.1} parent=1 // pred_check
      _
    $region23: #{mlp_forward.1} parent=1 // pred_check_branch
      %60 = sbr.rel (0) target = $region25
    $region24: #{mlp_forward.1} parent=1 // pred_region
      _
    $region25: #{mlp_forward.1} parent=1 // pred_fallthru
      _
    // Predicated region
    $region26: #{mlp_forward.1} parent=1 // pred_check
      _
    $region27: #{mlp_forward.1} parent=1 // pred_check_branch
      %62 = sbr.rel (0) target = $region29
    $region28: #{mlp_forward.1} parent=1 // pred_region
      %s64 = ssub.s32 2048, 2048
      %65 = vsyncadd [#allocation7], %s64
      %s66 = sshll.u32 [#allocation8], 4
      %s67 = int_to_ptr.vmem [resolvable:$true] %s66
      %72 = dma.hbm_to_vmem [thread:$0]  %s6, 2048, %s67, [#allocation7], 64, 64, 4
    $region29: #{mlp_forward.1} parent=1 // pred_fallthru
      _
    // Predicated region
    $region30: #{mlp_forward.1} parent=1 // pred_check
      _
    $region31: #{mlp_forward.1} parent=1 // pred_check_branch
      %74 = sbr.rel (0) target = $region33
    $region32: #{mlp_forward.1} parent=1 // pred_region
      _
    $region33: #{mlp_forward.1} parent=1 // pred_fallthru
      _
    // Predicated region
    $region34: #{mlp_forward.1} parent=1 // pred_check
      _
    $region35: #{mlp_forward.1} parent=1 // pred_check_branch
      %76 = sbr.rel (0) target = $region37
    $region36: #{mlp_forward.1} parent=1 // pred_region
      %s78 = ssub.s32 1024, 1024
      %79 = vsyncadd [#allocation10], %s78
      %s80 = sshll.u32 [#allocation9], 4
      %s81 = int_to_ptr.vmem [resolvable:$true] %s80
      %86 = dma.hbm_to_vmem [thread:$0]  %s8, 1024, %s81, [#allocation10], 64, 64, 4
    $region37: #{mlp_forward.1} parent=1 // pred_fallthru
      _
    // Predicated region
    $region38: #{mlp_forward.1} parent=1 // pred_check
      _
    $region39: #{mlp_forward.1} parent=1 // pred_check_branch
      %88 = sbr.rel (0) target = $region41
    $region40: #{mlp_forward.1} parent=1 // pred_region
      _
    $region41: #{mlp_forward.1} parent=1 // pred_fallthru
      _
    // Predicated region
    $region42: #{mlp_forward.1} parent=1 // pred_check
      _
    $region43: #{mlp_forward.1} parent=1 // pred_check_branch
      %90 = sbr.rel (0) target = $region45
    $region44: #{mlp_forward.1} parent=1 // pred_region
      %s92 = ssub.s32 1024, 1024
      %93 = vsyncadd [#allocation10], %s92
      %s94 = sshll.u32 [#allocation11], 4
      %s95 = int_to_ptr.vmem [resolvable:$true] %s94
      %100 = dma.hbm_to_vmem [thread:$0]  %s10, 1024, %s95, [#allocation10], 64, 64, 4
    $region45: #{mlp_forward.1} parent=1 // pred_fallthru
      _
    // Predicated region
    $region46: #{mlp_forward.1} parent=1 // pred_check
      _
    $region47: #{mlp_forward.1} parent=1 // pred_check_branch
      %102 = sbr.rel (0) target = $region49
    $region48: #{mlp_forward.1} parent=1 // pred_region
      _
    $region49: #{mlp_forward.1} parent=1 // pred_fallthru
      _
    // Predicated region
    $region50: #{mlp_forward.1} parent=1 // pred_check
      _
    $region51: #{mlp_forward.1} parent=1 // pred_check_branch
      %104 = sbr.rel (0) target = $region53
    $region52: #{mlp_forward.1} parent=1 // pred_region
      %105 = dma.done [#allocation4], 16
    $region53: #{mlp_forward.1} parent=1 // pred_fallthru
      _
    // Predicated region
    $region54: #{mlp_forward.1} parent=1 // pred_check
      _
    $region55: #{mlp_forward.1} parent=1 // pred_check_branch
      %107 = sbr.rel (0) target = $region57
    $region56: #{mlp_forward.1} parent=1 // pred_region
      %108 = dma.done [#allocation3], 1024
    $region57: #{mlp_forward.1} parent=1 // pred_fallthru
      _
    // Predicated region
    $region58: #{mlp_forward.1} parent=1 // pred_check
      _
    $region59: #{mlp_forward.1} parent=1 // pred_check_branch
      %110 = sbr.rel (0) target = $region61
    $region60: #{mlp_forward.1} parent=1 // pred_region
      %111 = dma.done [#allocation7], 8192
    $region61: #{mlp_forward.1} parent=1 // pred_fallthru
      _
    // Predicated region
    $region62: #{mlp_forward.1} parent=1 // pred_check
      _
    $region63: #{mlp_forward.1} parent=1 // pred_check_branch
      %113 = sbr.rel (0) target = $region65
    $region64: #{mlp_forward.1} parent=1 // pred_region
      %114 = dma.done [#allocation7], 2048
    $region65: #{mlp_forward.1} parent=1 // pred_fallthru
      _
    // Predicated region
    $region66: #{mlp_forward.1} parent=1 // pred_check
      _
    $region67: #{mlp_forward.1} parent=1 // pred_check_branch
      %116 = sbr.rel (0) target = $region69
    $region68: #{mlp_forward.1} parent=1 // pred_region
      %117 = dma.done [#allocation10], 1024
    $region69: #{mlp_forward.1} parent=1 // pred_fallthru
      _
    // Predicated region
    $region70: #{mlp_forward.1} parent=1 // pred_check
      _
    $region71: #{mlp_forward.1} parent=1 // pred_check_branch
      %119 = sbr.rel (0) target = $region73
    $region72: #{mlp_forward.1} parent=1 // pred_region
      %120 = dma.done [#allocation10], 1024
    $region73: #{mlp_forward.1} parent=1 // pred_fallthru
      _
    %121 = sfence
    %s123 = sld [smem:[#allocation2]]
    %p125 = scmp.ne.f32.partialorder %s123, %s123
    %s126 = sshrl.u32 %s123, 16
    %s127 = sand.u32 %s126, 1
    %s128 = sadd.s32 32767, %s127
    %s129 = sadd.s32 %s123, %s128
    %s130 = sand.u32 %s129, 4294901760
    %s131 = scalar_select %p125, 2143289344, %s130
    %s133 = sshrl.u32 %s131, 16
    %s134 = sld [smem:[#allocation2 + $0x1]]
    %p136 = scmp.ne.f32.partialorder %s134, %s134
    %s137 = sshrl.u32 %s134, 16
    %s138 = sand.u32 %s137, 1
    %s139 = sadd.s32 32767, %s138
    %s140 = sadd.s32 %s134, %s139
    %s141 = sand.u32 %s140, 4294901760
    %s142 = scalar_select %p136, 2143289344, %s141
    %s144 = sshrl.u32 %s142, 16
    %s145 = sld [smem:[#allocation2 + $0x2]]
    %p147 = scmp.ne.f32.partialorder %s145, %s145
    %s148 = sshrl.u32 %s145, 16
    %s149 = sand.u32 %s148, 1
    %s150 = sadd.s32 32767, %s149
    %s151 = sadd.s32 %s145, %s150
    %s152 = sand.u32 %s151, 4294901760
    %s153 = scalar_select %p147, 2143289344, %s152
    %s155 = sshrl.u32 %s153, 16
    %s156 = sld [smem:[#allocation2 + $0x3]]
    %p158 = scmp.ne.f32.partialorder %s156, %s156
    %s159 = sshrl.u32 %s156, 16
    %s160 = sand.u32 %s159, 1
    %s161 = sadd.s32 32767, %s160
    %s162 = sadd.s32 %s156, %s161
    %s163 = sand.u32 %s162, 4294901760
    %s164 = scalar_select %p158, 2143289344, %s163
    %s166 = sshrl.u32 %s164, 16
    %v167 = vld [vmem:[%s1] sm:$0xf]
    %v168 = vld [vmem:[%s1 + $0x4] sm:$0xf]
    %v169 = vld [vmem:[#allocation5] sm:$0xff]
    %v170 = vld [vmem:[#allocation5 + $0x8] sm:$0xff]
    %v171 = vld [vmem:[#allocation5 + $0x10] sm:$0xff]
    %v172 = vld [vmem:[#allocation5 + $0x18] sm:$0xff]
    %v173 = vld [vmem:[#allocation5 + $0x20] sm:$0xff]
    %v174 = vld [vmem:[#allocation5 + $0x28] sm:$0xff]
    %v175 = vld [vmem:[#allocation5 + $0x30] sm:$0xff]
    %v176 = vld [vmem:[#allocation5 + $0x38] sm:$0xff]
    %v179 = vunpack.c.l.b16 %v167
    %v180 = vunpack.c.l.b16 %v168
    %v181 = vpack.c.b16 %v180, %v179
    %v190 = vunpack.c.l.b16 %v169
    %v191 = vunpack.c.h.b16 %v169
    %v192 = vunpack.c.l.b16 %v170
    %v193 = vunpack.c.h.b16 %v170
    %v194 = vunpack.c.l.b16 %v171
    %v195 = vunpack.c.h.b16 %v171
    %v196 = vunpack.c.l.b16 %v172
    %v197 = vunpack.c.h.b16 %v172
    %v198 = vunpack.c.l.b16 %v173
    %v199 = vunpack.c.h.b16 %v173
    %v200 = vunpack.c.l.b16 %v174
    %v201 = vunpack.c.h.b16 %v174
    %v202 = vunpack.c.l.b16 %v175
    %v203 = vunpack.c.h.b16 %v175
    %v204 = vunpack.c.l.b16 %v176
    %v205 = vunpack.c.h.b16 %v176
    %v206 = vpack.c.b16 %v194, %v190
    %v207 = vpack.c.b16 %v195, %v191
    %v208 = vpack.c.b16 %v196, %v192
    %v209 = vpack.c.b16 %v197, %v193
    %v210 = vpack.c.b16 %v202, %v198
    %v211 = vpack.c.b16 %v203, %v199
    %v212 = vpack.c.b16 %v204, %v200
    %v213 = vpack.c.b16 %v205, %v201
    %vm222 = vcmask 261120
    %v224 = vsel %vm222, %v181, 0
    %226 = vmatprep.subr.bf16.mxu0 %v207
    %227 = vmatpush1.bf16.msra.mxu0 %v206
    %228 = vmatprep.subr.bf16.mxu0 %v211
    %229 = vmatpush1.bf16.msra.mxu0 %v210
    %230 = vmatprep.subr.bf16.mxu0 0
    %231 = vmatpush1.bf16.msra.mxu0 0
    %232 = vmatprep.subr.bf16.mxu0 0
    %233 = vmatpush1.bf16.msra.mxu0 0
    %234 = vmatprep.subr.bf16.mxu0 0
    %235 = vmatpush1.bf16.msra.mxu0 0
    %236 = vmatprep.subr.bf16.mxu0 0
    %237 = vmatpush1.bf16.msra.mxu0 0
    %238 = vmatprep.subr.bf16.mxu0 0
    %239 = vmatpush1.bf16.msra.mxu0 0
    %240 = vmatprep.subr.bf16.mxu0 0
    %241 = vmatpush1.bf16.msra.mxu0 0
    %242 = vmatprep.subr.bf16.mxu0 0
    %243 = vmatpush1.bf16.msra.mxu0 0
    %244 = vmatprep.subr.bf16.mxu0 0
    %245 = vmatpush1.bf16.msra.mxu0 0
    %246 = vmatprep.subr.bf16.mxu0 0
    %247 = vmatpush1.bf16.msra.mxu0 0
    %248 = vmatprep.subr.bf16.mxu0 0
    %249 = vmatpush1.bf16.msra.mxu0 0
    %250 = vmatprep.subr.bf16.mxu0 0
    %251 = vmatpush1.bf16.msra.mxu0 0
    %252 = vmatprep.subr.bf16.mxu0 0
    %253 = vmatpush1.bf16.msra.mxu0 0
    %254 = vmatprep.subr.bf16.mxu0 0
    %255 = vmatpush1.bf16.msra.mxu0 0
    %256 = vmatprep.subr.bf16.mxu0 0
    %257 = vmatpush1.bf16.msra.mxu0 0
    %258 = vmatprep.mubr.bf16.mxu0 0
    %259 = vmatmul.mubr.bf16.gmra.mrb[0].mxu0 %v224
    %v260 = vpop.f32.mrb[0].mxu0
    %v261 = vadd.f32 0.0, %v260
    %v262 = vpop.f32.mrb[0].mxu0
    %v263 = vadd.f32 0.0, %v262
    %v264 = vpop.f32.mrb[0].mxu0
    %v265 = vadd.f32 0.0, %v264
    %v266 = vpop.f32.mrb[0].mxu0
    %v267 = vadd.f32 0.0, %v266
    %268 = vdwg.mxu0
    %269 = vmatprep.subr.bf16.mxu0 %v209
    %270 = vmatpush1.bf16.msra.mxu0 %v208
    %271 = vmatprep.subr.bf16.mxu0 %v213
    %272 = vmatpush1.bf16.msra.mxu0 %v212
    %273 = vmatprep.subr.bf16.mxu0 0
    %274 = vmatpush1.bf16.msra.mxu0 0
    %275 = vmatprep.subr.bf16.mxu0 0
    %276 = vmatpush1.bf16.msra.mxu0 0
    %277 = vmatprep.subr.bf16.mxu0 0
    %278 = vmatpush1.bf16.msra.mxu0 0
    %279 = vmatprep.subr.bf16.mxu0 0
    %280 = vmatpush1.bf16.msra.mxu0 0
    %281 = vmatprep.subr.bf16.mxu0 0
    %282 = vmatpush1.bf16.msra.mxu0 0
    %283 = vmatprep.subr.bf16.mxu0 0
    %284 = vmatpush1.bf16.msra.mxu0 0
    %285 = vmatprep.subr.bf16.mxu0 0
    %286 = vmatpush1.bf16.msra.mxu0 0
    %287 = vmatprep.subr.bf16.mxu0 0
    %288 = vmatpush1.bf16.msra.mxu0 0
    %289 = vmatprep.subr.bf16.mxu0 0
    %290 = vmatpush1.bf16.msra.mxu0 0
    %291 = vmatprep.subr.bf16.mxu0 0
    %292 = vmatpush1.bf16.msra.mxu0 0
    %293 = vmatprep.subr.bf16.mxu0 0
    %294 = vmatpush1.bf16.msra.mxu0 0
    %295 = vmatprep.subr.bf16.mxu0 0
    %296 = vmatpush1.bf16.msra.mxu0 0
    %297 = vmatprep.subr.bf16.mxu0 0
    %298 = vmatpush1.bf16.msra.mxu0 0
    %299 = vmatprep.subr.bf16.mxu0 0
    %300 = vmatpush1.bf16.msra.mxu0 0
    %301 = vmatprep.mubr.bf16.mxu0 0
    %302 = vmatmul.mubr.bf16.gmra.mrb[0].mxu0 %v224
    %v303 = vpop.f32.mrb[0].mxu0
    %v304 = vadd.f32 0.0, %v303
    %v305 = vpop.f32.mrb[0].mxu0
    %v306 = vadd.f32 0.0, %v305
    %v307 = vpop.f32.mrb[0].mxu0
    %v308 = vadd.f32 0.0, %v307
    %v309 = vpop.f32.mrb[0].mxu0
    %v310 = vadd.f32 0.0, %v309
    %311 = vdwg.mxu0
    %v312 = vpack.c.bf16 %v265, %v261
    %v313 = vpack.c.bf16 %v267, %v263
    %v314 = vpack.c.bf16 %v308, %v304
    %v315 = vpack.c.bf16 %v310, %v306
    %v316 = vld [vmem:[%s3] sm:$0xf]
    %v319 = vunpack.c.l.s4 1966171168
    %v320 = vunpack.c.0.s8 %v319
    %v321 = vlaneseq
    %v322 = vshrl.u32 %v321, 7
    %v323 = vsub.s32 %v320, %v322
    %v324 = vrot.slane %v316, %v323
    %v325 = vcombine.high %v324, %v324
    %v327 = vunpack.c.l.s4 1966171168
    %v328 = vunpack.c.0.s8 %v327
    %v329 = vlaneseq
    %v330 = vshrl.u32 %v329, 7
    %v331 = vsub.s32 %v328, %v330
    %v332 = vrot.slane %v324, %v331
    %v334 = vunpack.c.l.s4 1966171168
    %v335 = vunpack.c.0.s8 %v334
    %v336 = vlaneseq
    %v337 = vshrl.u32 %v336, 7
    %v338 = vsub.s32 %v335, %v337
    %v339 = vrot.slane %v325, %v338
    %v340 = vcombine.high %v332, %v332
    %v341 = vcombine.high %v339, %v339
    %v343 = vpack.i.b16 %v332, %v332
    %v345 = vlaneseq
    %v346 = vshrl.u32 %v345, 7
    %v347 = vsub.s32 0, %v346
    %v348 = vrot.slane %v343, %v347
    %v350 = vpack.i.b16 %v339, %v339
    %v352 = vlaneseq
    %v353 = vshrl.u32 %v352, 7
    %v354 = vsub.s32 0, %v353
    %v355 = vrot.slane %v350, %v354
    %v357 = vpack.i.b16 %v340, %v340
    %v359 = vlaneseq
    %v360 = vshrl.u32 %v359, 7
    %v361 = vsub.s32 0, %v360
    %v362 = vrot.slane %v357, %v361
    %v364 = vpack.i.b16 %v341, %v341
    %v366 = vlaneseq
    %v367 = vshrl.u32 %v366, 7
    %v368 = vsub.s32 0, %v367
    %v369 = vrot.slane %v364, %v368
    %v370 = vadd.bf16 %v312, %v348
    %v371 = vadd.bf16 %v313, %v355
    %v372 = vadd.bf16 %v314, %v362
    %v373 = vadd.bf16 %v315, %v369
    %vm374 = vcmp.ge.bf16.partialorder %v370, 0
    %vm375 = vcmp.ge.bf16.partialorder %v371, 0
    %vm376 = vcmp.ge.bf16.partialorder %v372, 0
    %vm377 = vcmp.ge.bf16.partialorder %v373, 0
    %s378 = sshll.u32 %s133, 16
    %s379 = sor.u32 %s133, %s378
    %v380 = vstv %s379
    %v382 = vmul.bf16 %v380, %v370
    %v383 = vmul.bf16 %v380, %v371
    %v384 = vmul.bf16 %v380, %v372
    %v385 = vmul.bf16 %v380, %v373
    %v386 = vsel %vm374, %v370, %v382
    %v387 = vsel %vm375, %v371, %v383
    %v388 = vsel %vm376, %v372, %v384
    %v389 = vsel %vm377, %v373, %v385
    %v390 = vld [vmem:[#allocation6] sm:$0xff]
    %v391 = vld [vmem:[#allocation6 + $0x8] sm:$0xff]
    %v392 = vld [vmem:[#allocation6 + $0x10] sm:$0xff]
    %v393 = vld [vmem:[#allocation6 + $0x18] sm:$0xff]
    %v394 = vld [vmem:[#allocation6 + $0x20] sm:$0xff]
    %v395 = vld [vmem:[#allocation6 + $0x28] sm:$0xff]
    %v396 = vld [vmem:[#allocation6 + $0x30] sm:$0xff]
    %v397 = vld [vmem:[#allocation6 + $0x38] sm:$0xff]
    %v398 = vld [vmem:[#allocation6 + $0x40] sm:$0xff]
    %v399 = vld [vmem:[#allocation6 + $0x48] sm:$0xff]
    %v400 = vld [vmem:[#allocation6 + $0x50] sm:$0xff]
    %v401 = vld [vmem:[#allocation6 + $0x58] sm:$0xff]
    %v402 = vld [vmem:[#allocation6 + $0x60] sm:$0xff]
    %v403 = vld [vmem:[#allocation6 + $0x68] sm:$0xff]
    %v404 = vld [vmem:[#allocation6 + $0x70] sm:$0xff]
    %v405 = vld [vmem:[#allocation6 + $0x78] sm:$0xff]
    %v406 = vld [vmem:[#allocation6 + $0x80] sm:$0xff]
    %v407 = vld [vmem:[#allocation6 + $0x88] sm:$0xff]
    %v408 = vld [vmem:[#allocation6 + $0x90] sm:$0xff]
    %v409 = vld [vmem:[#allocation6 + $0x98] sm:$0xff]
    %v410 = vld [vmem:[#allocation6 + $0xa0] sm:$0xff]
    %v411 = vld [vmem:[#allocation6 + $0xa8] sm:$0xff]
    %v412 = vld [vmem:[#allocation6 + $0xb0] sm:$0xff]
    %v413 = vld [vmem:[#allocation6 + $0xb8] sm:$0xff]
    %v414 = vld [vmem:[#allocation6 + $0xc0] sm:$0xff]
    %v415 = vld [vmem:[#allocation6 + $0xc8] sm:$0xff]
    %v416 = vld [vmem:[#allocation6 + $0xd0] sm:$0xff]
    %v417 = vld [vmem:[#allocation6 + $0xd8] sm:$0xff]
    %v418 = vld [vmem:[#allocation6 + $0xe0] sm:$0xff]
    %v419 = vld [vmem:[#allocation6 + $0xe8] sm:$0xff]
    %v420 = vld [vmem:[#allocation6 + $0xf0] sm:$0xff]
    %v421 = vld [vmem:[#allocation6 + $0xf8] sm:$0xff]
    %v422 = vld [vmem:[#allocation6 + $0x100] sm:$0xff]
    %v423 = vld [vmem:[#allocation6 + $0x108] sm:$0xff]
    %v424 = vld [vmem:[#allocation6 + $0x110] sm:$0xff]
    %v425 = vld [vmem:[#allocation6 + $0x118] sm:$0xff]
    %v426 = vld [vmem:[#allocation6 + $0x120] sm:$0xff]
    %v427 = vld [vmem:[#allocation6 + $0x128] sm:$0xff]
    %v428 = vld [vmem:[#allocation6 + $0x130] sm:$0xff]
    %v429 = vld [vmem:[#allocation6 + $0x138] sm:$0xff]
    %v430 = vld [vmem:[#allocation6 + $0x140] sm:$0xff]
    %v431 = vld [vmem:[#allocation6 + $0x148] sm:$0xff]
    %v432 = vld [vmem:[#allocation6 + $0x150] sm:$0xff]
    %v433 = vld [vmem:[#allocation6 + $0x158] sm:$0xff]
    %v434 = vld [vmem:[#allocation6 + $0x160] sm:$0xff]
    %v435 = vld [vmem:[#allocation6 + $0x168] sm:$0xff]
    %v436 = vld [vmem:[#allocation6 + $0x170] sm:$0xff]
    %v437 = vld [vmem:[#allocation6 + $0x178] sm:$0xff]
    %v438 = vld [vmem:[#allocation6 + $0x180] sm:$0xff]
    %v439 = vld [vmem:[#allocation6 + $0x188] sm:$0xff]
    %v440 = vld [vmem:[#allocation6 + $0x190] sm:$0xff]
    %v441 = vld [vmem:[#allocation6 + $0x198] sm:$0xff]
    %v442 = vld [vmem:[#allocation6 + $0x1a0] sm:$0xff]
    %v443 = vld [vmem:[#allocation6 + $0x1a8] sm:$0xff]
    %v444 = vld [vmem:[#allocation6 + $0x1b0] sm:$0xff]
    %v445 = vld [vmem:[#allocation6 + $0x1b8] sm:$0xff]
    %v446 = vld [vmem:[#allocation6 + $0x1c0] sm:$0xff]
    %v447 = vld [vmem:[#allocation6 + $0x1c8] sm:$0xff]
    %v448 = vld [vmem:[#allocation6 + $0x1d0] sm:$0xff]
    %v449 = vld [vmem:[#allocation6 + $0x1d8] sm:$0xff]
    %v450 = vld [vmem:[#allocation6 + $0x1e0] sm:$0xff]
    %v451 = vld [vmem:[#allocation6 + $0x1e8] sm:$0xff]
    %v452 = vld [vmem:[#allocation6 + $0x1f0] sm:$0xff]
    %v453 = vld [vmem:[#allocation6 + $0x1f8] sm:$0xff]
    %v518 = vunpack.c.l.b16 %v390
    %v519 = vunpack.c.h.b16 %v390
    %v520 = vunpack.c.l.b16 %v391
    %v521 = vunpack.c.h.b16 %v391
    %v522 = vunpack.c.l.b16 %v392
    %v523 = vunpack.c.h.b16 %v392
    %v524 = vunpack.c.l.b16 %v393
    %v525 = vunpack.c.h.b16 %v393
    %v526 = vunpack.c.l.b16 %v394
    %v527 = vunpack.c.h.b16 %v394
    %v528 = vunpack.c.l.b16 %v395
    %v529 = vunpack.c.h.b16 %v395
    %v530 = vunpack.c.l.b16 %v396
    %v531 = vunpack.c.h.b16 %v396
    %v532 = vunpack.c.l.b16 %v397
    %v533 = vunpack.c.h.b16 %v397
    %v534 = vunpack.c.l.b16 %v398
    %v535 = vunpack.c.h.b16 %v398
    %v536 = vunpack.c.l.b16 %v399
    %v537 = vunpack.c.h.b16 %v399
    %v538 = vunpack.c.l.b16 %v400
    %v539 = vunpack.c.h.b16 %v400
    %v540 = vunpack.c.l.b16 %v401
    %v541 = vunpack.c.h.b16 %v401
    %v542 = vunpack.c.l.b16 %v402
    %v543 = vunpack.c.h.b16 %v402
    %v544 = vunpack.c.l.b16 %v403
    %v545 = vunpack.c.h.b16 %v403
    %v546 = vunpack.c.l.b16 %v404
    %v547 = vunpack.c.h.b16 %v404
    %v548 = vunpack.c.l.b16 %v405
    %v549 = vunpack.c.h.b16 %v405
    %v550 = vunpack.c.l.b16 %v406
    %v551 = vunpack.c.h.b16 %v406
    %v552 = vunpack.c.l.b16 %v407
    %v553 = vunpack.c.h.b16 %v407
    %v554 = vunpack.c.l.b16 %v408
    %v555 = vunpack.c.h.b16 %v408
    %v556 = vunpack.c.l.b16 %v409
    %v557 = vunpack.c.h.b16 %v409
    %v558 = vunpack.c.l.b16 %v410
    %v559 = vunpack.c.h.b16 %v410
    %v560 = vunpack.c.l.b16 %v411
    %v561 = vunpack.c.h.b16 %v411
    %v562 = vunpack.c.l.b16 %v412
    %v563 = vunpack.c.h.b16 %v412
    %v564 = vunpack.c.l.b16 %v413
    %v565 = vunpack.c.h.b16 %v413
    %v566 = vunpack.c.l.b16 %v414
    %v567 = vunpack.c.h.b16 %v414
    %v568 = vunpack.c.l.b16 %v415
    %v569 = vunpack.c.h.b16 %v415
    %v570 = vunpack.c.l.b16 %v416
    %v571 = vunpack.c.h.b16 %v416
    %v572 = vunpack.c.l.b16 %v417
    %v573 = vunpack.c.h.b16 %v417
    %v574 = vunpack.c.l.b16 %v418
    %v575 = vunpack.c.h.b16 %v418
    %v576 = vunpack.c.l.b16 %v419
    %v577 = vunpack.c.h.b16 %v419
    %v578 = vunpack.c.l.b16 %v420
    %v579 = vunpack.c.h.b16 %v420
    %v580 = vunpack.c.l.b16 %v421
    %v581 = vunpack.c.h.b16 %v421
    %v582 = vunpack.c.l.b16 %v422
    %v583 = vunpack.c.h.b16 %v422
    %v584 = vunpack.c.l.b16 %v423
    %v585 = vunpack.c.h.b16 %v423
    %v586 = vunpack.c.l.b16 %v424
    %v587 = vunpack.c.h.b16 %v424
    %v588 = vunpack.c.l.b16 %v425
    %v589 = vunpack.c.h.b16 %v425
    %v590 = vunpack.c.l.b16 %v426
    %v591 = vunpack.c.h.b16 %v426
    %v592 = vunpack.c.l.b16 %v427
    %v593 = vunpack.c.h.b16 %v427
    %v594 = vunpack.c.l.b16 %v428
    %v595 = vunpack.c.h.b16 %v428
    %v596 = vunpack.c.l.b16 %v429
    %v597 = vunpack.c.h.b16 %v429
    %v598 = vunpack.c.l.b16 %v430
    %v599 = vunpack.c.h.b16 %v430
    %v600 = vunpack.c.l.b16 %v431
    %v601 = vunpack.c.h.b16 %v431
    %v602 = vunpack.c.l.b16 %v432
    %v603 = vunpack.c.h.b16 %v432
    %v604 = vunpack.c.l.b16 %v433
    %v605 = vunpack.c.h.b16 %v433
    %v606 = vunpack.c.l.b16 %v434
    %v607 = vunpack.c.h.b16 %v434
    %v608 = vunpack.c.l.b16 %v435
    %v609 = vunpack.c.h.b16 %v435
    %v610 = vunpack.c.l.b16 %v436
    %v611 = vunpack.c.h.b16 %v436
    %v612 = vunpack.c.l.b16 %v437
    %v613 = vunpack.c.h.b16 %v437
    %v614 = vunpack.c.l.b16 %v438
    %v615 = vunpack.c.h.b16 %v438
    %v616 = vunpack.c.l.b16 %v439
    %v617 = vunpack.c.h.b16 %v439
    %v618 = vunpack.c.l.b16 %v440
    %v619 = vunpack.c.h.b16 %v440
    %v620 = vunpack.c.l.b16 %v441
    %v621 = vunpack.c.h.b16 %v441
    %v622 = vunpack.c.l.b16 %v442
    %v623 = vunpack.c.h.b16 %v442
    %v624 = vunpack.c.l.b16 %v443
    %v625 = vunpack.c.h.b16 %v443
    %v626 = vunpack.c.l.b16 %v444
    %v627 = vunpack.c.h.b16 %v444
    %v628 = vunpack.c.l.b16 %v445
    %v629 = vunpack.c.h.b16 %v445
    %v630 = vunpack.c.l.b16 %v446
    %v631 = vunpack.c.h.b16 %v446
    %v632 = vunpack.c.l.b16 %v447
    %v633 = vunpack.c.h.b16 %v447
    %v634 = vunpack.c.l.b16 %v448
    %v635 = vunpack.c.h.b16 %v448
    %v636 = vunpack.c.l.b16 %v449
    %v637 = vunpack.c.h.b16 %v449
    %v638 = vunpack.c.l.b16 %v450
    %v639 = vunpack.c.h.b16 %v450
    %v640 = vunpack.c.l.b16 %v451
    %v641 = vunpack.c.h.b16 %v451
    %v642 = vunpack.c.l.b16 %v452
    %v643 = vunpack.c.h.b16 %v452
    %v644 = vunpack.c.l.b16 %v453
    %v645 = vunpack.c.h.b16 %v453
    %v646 = vpack.c.b16 %v520, %v518
    %v647 = vpack.c.b16 %v521, %v519
    %v648 = vpack.c.b16 %v524, %v522
    %v649 = vpack.c.b16 %v525, %v523
    %v650 = vpack.c.b16 %v528, %v526
    %v651 = vpack.c.b16 %v529, %v527
    %v652 = vpack.c.b16 %v532, %v530
    %v653 = vpack.c.b16 %v533, %v531
    %v654 = vpack.c.b16 %v536, %v534
    %v655 = vpack.c.b16 %v537, %v535
    %v656 = vpack.c.b16 %v540, %v538
    %v657 = vpack.c.b16 %v541, %v539
    %v658 = vpack.c.b16 %v544, %v542
    %v659 = vpack.c.b16 %v545, %v543
    %v660 = vpack.c.b16 %v548, %v546
    %v661 = vpack.c.b16 %v549, %v547
    %v662 = vpack.c.b16 %v552, %v550
    %v663 = vpack.c.b16 %v553, %v551
    %v664 = vpack.c.b16 %v556, %v554
    %v665 = vpack.c.b16 %v557, %v555
    %v666 = vpack.c.b16 %v560, %v558
    %v667 = vpack.c.b16 %v561, %v559
    %v668 = vpack.c.b16 %v564, %v562
    %v669 = vpack.c.b16 %v565, %v563
    %v670 = vpack.c.b16 %v568, %v566
    %v671 = vpack.c.b16 %v569, %v567
    %v672 = vpack.c.b16 %v572, %v570
    %v673 = vpack.c.b16 %v573, %v571
    %v674 = vpack.c.b16 %v576, %v574
    %v675 = vpack.c.b16 %v577, %v575
    %v676 = vpack.c.b16 %v580, %v578
    %v677 = vpack.c.b16 %v581, %v579
    %v678 = vpack.c.b16 %v584, %v582
    %v679 = vpack.c.b16 %v585, %v583
    %v680 = vpack.c.b16 %v588, %v586
    %v681 = vpack.c.b16 %v589, %v587
    %v682 = vpack.c.b16 %v592, %v590
    %v683 = vpack.c.b16 %v593, %v591
    %v684 = vpack.c.b16 %v596, %v594
    %v685 = vpack.c.b16 %v597, %v595
    %v686 = vpack.c.b16 %v600, %v598
    %v687 = vpack.c.b16 %v601, %v599
    %v688 = vpack.c.b16 %v604, %v602
    %v689 = vpack.c.b16 %v605, %v603
    %v690 = vpack.c.b16 %v608, %v606
    %v691 = vpack.c.b16 %v609, %v607
    %v692 = vpack.c.b16 %v612, %v610
    %v693 = vpack.c.b16 %v613, %v611
    %v694 = vpack.c.b16 %v616, %v614
    %v695 = vpack.c.b16 %v617, %v615
    %v696 = vpack.c.b16 %v620, %v618
    %v697 = vpack.c.b16 %v621, %v619
    %v698 = vpack.c.b16 %v624, %v622
    %v699 = vpack.c.b16 %v625, %v623
    %v700 = vpack.c.b16 %v628, %v626
    %v701 = vpack.c.b16 %v629, %v627
    %v702 = vpack.c.b16 %v632, %v630
    %v703 = vpack.c.b16 %v633, %v631
    %v704 = vpack.c.b16 %v636, %v634
    %v705 = vpack.c.b16 %v637, %v635
    %v706 = vpack.c.b16 %v640, %v638
    %v707 = vpack.c.b16 %v641, %v639
    %v708 = vpack.c.b16 %v644, %v642
    %v709 = vpack.c.b16 %v645, %v643
    %774 = vmatprep.subr.bf16.mxu0 %v647
    %775 = vmatpush1.bf16.msra.mxu0 %v646
    %776 = vmatprep.subr.bf16.mxu0 %v649
    %777 = vmatpush1.bf16.msra.mxu0 %v648
    %778 = vmatprep.subr.bf16.mxu0 %v651
    %779 = vmatpush1.bf16.msra.mxu0 %v650
    %780 = vmatprep.subr.bf16.mxu0 %v653
    %781 = vmatpush1.bf16.msra.mxu0 %v652
    %782 = vmatprep.subr.bf16.mxu0 %v655
    %783 = vmatpush1.bf16.msra.mxu0 %v654
    %784 = vmatprep.subr.bf16.mxu0 %v657
    %785 = vmatpush1.bf16.msra.mxu0 %v656
    %786 = vmatprep.subr.bf16.mxu0 %v659
    %787 = vmatpush1.bf16.msra.mxu0 %v658
    %788 = vmatprep.subr.bf16.mxu0 %v661
    %789 = vmatpush1.bf16.msra.mxu0 %v660
    %790 = vmatprep.subr.bf16.mxu0 %v663
    %791 = vmatpush1.bf16.msra.mxu0 %v662
    %792 = vmatprep.subr.bf16.mxu0 %v665
    %793 = vmatpush1.bf16.msra.mxu0 %v664
    %794 = vmatprep.subr.bf16.mxu0 %v667
    %795 = vmatpush1.bf16.msra.mxu0 %v666
    %796 = vmatprep.subr.bf16.mxu0 %v669
    %797 = vmatpush1.bf16.msra.mxu0 %v668
    %798 = vmatprep.subr.bf16.mxu0 %v671
    %799 = vmatpush1.bf16.msra.mxu0 %v670
    %800 = vmatprep.subr.bf16.mxu0 %v673
    %801 = vmatpush1.bf16.msra.mxu0 %v672
    %802 = vmatprep.subr.bf16.mxu0 %v675
    %803 = vmatpush1.bf16.msra.mxu0 %v674
    %804 = vmatprep.subr.bf16.mxu0 %v677
    %805 = vmatpush1.bf16.msra.mxu0 %v676
    %806 = vmatprep.mubr.bf16.mxu0 %v387
    %807 = vmatmul.mubr.bf16.gmra.mrb[0].mxu0 %v386
    %v808 = vpop.f32.mrb[0].mxu0
    %v809 = vadd.f32 0.0, %v808
    %v810 = vpop.f32.mrb[0].mxu0
    %v811 = vadd.f32 0.0, %v810
    %v812 = vpop.f32.mrb[0].mxu0
    %v813 = vadd.f32 0.0, %v812
    %v814 = vpop.f32.mrb[0].mxu0
    %v815 = vadd.f32 0.0, %v814
    %816 = vdwg.mxu0
    %817 = vmatprep.subr.bf16.mxu0 %v679
    %818 = vmatpush1.bf16.msra.mxu0 %v678
    %819 = vmatprep.subr.bf16.mxu0 %v681
    %820 = vmatpush1.bf16.msra.mxu0 %v680
    %821 = vmatprep.subr.bf16.mxu0 %v683
    %822 = vmatpush1.bf16.msra.mxu0 %v682
    %823 = vmatprep.subr.bf16.mxu0 %v685
    %824 = vmatpush1.bf16.msra.mxu0 %v684
    %825 = vmatprep.subr.bf16.mxu0 %v687
    %826 = vmatpush1.bf16.msra.mxu0 %v686
    %827 = vmatprep.subr.bf16.mxu0 %v689
    %828 = vmatpush1.bf16.msra.mxu0 %v688
    %829 = vmatprep.subr.bf16.mxu0 %v691
    %830 = vmatpush1.bf16.msra.mxu0 %v690
    %831 = vmatprep.subr.bf16.mxu0 %v693
    %832 = vmatpush1.bf16.msra.mxu0 %v692
    %833 = vmatprep.subr.bf16.mxu0 %v695
    %834 = vmatpush1.bf16.msra.mxu0 %v694
    %835 = vmatprep.subr.bf16.mxu0 %v697
    %836 = vmatpush1.bf16.msra.mxu0 %v696
    %837 = vmatprep.subr.bf16.mxu0 %v699
    %838 = vmatpush1.bf16.msra.mxu0 %v698
    %839 = vmatprep.subr.bf16.mxu0 %v701
    %840 = vmatpush1.bf16.msra.mxu0 %v700
    %841 = vmatprep.subr.bf16.mxu0 %v703
    %842 = vmatpush1.bf16.msra.mxu0 %v702
    %843 = vmatprep.subr.bf16.mxu0 %v705
    %844 = vmatpush1.bf16.msra.mxu0 %v704
    %845 = vmatprep.subr.bf16.mxu0 %v707
    %846 = vmatpush1.bf16.msra.mxu0 %v706
    %847 = vmatprep.subr.bf16.mxu0 %v709
    %848 = vmatpush1.bf16.msra.mxu0 %v708
    %849 = vmatprep.mubr.bf16.mxu0 %v389
    %850 = vmatmul.mubr.bf16.gmra.mrb[0].mxu0 %v388
    %v851 = vpop.f32.mrb[0].mxu0
    %v852 = vadd.f32 %v809, %v851
    %v853 = vpop.f32.mrb[0].mxu0
    %v854 = vadd.f32 %v811, %v853
    %v855 = vpop.f32.mrb[0].mxu0
    %v856 = vadd.f32 %v813, %v855
    %v857 = vpop.f32.mrb[0].mxu0
    %v858 = vadd.f32 %v815, %v857
    %859 = vdwg.mxu0
    %v860 = vpack.c.bf16 %v856, %v852
    %v861 = vpack.c.bf16 %v858, %v854
    %v862 = vld [vmem:[%s5] sm:$0x3]
    %v865 = vunpack.c.l.s4 1966171168
    %v866 = vunpack.c.0.s8 %v865
    %v867 = vlaneseq
    %v868 = vshrl.u32 %v867, 7
    %v869 = vsub.s32 %v866, %v868
    %v870 = vrot.slane %v862, %v869
    %v871 = vcombine.high %v870, %v870
    %v873 = vunpack.c.l.s4 1966171168
    %v874 = vunpack.c.0.s8 %v873
    %v875 = vlaneseq
    %v876 = vshrl.u32 %v875, 7
    %v877 = vsub.s32 %v874, %v876
    %v878 = vrot.slane %v870, %v877
    %v880 = vunpack.c.l.s4 1966171168
    %v881 = vunpack.c.0.s8 %v880
    %v882 = vlaneseq
    %v883 = vshrl.u32 %v882, 7
    %v884 = vsub.s32 %v881, %v883
    %v885 = vrot.slane %v871, %v884
    %v887 = vpack.i.b16 %v878, %v878
    %v889 = vlaneseq
    %v890 = vshrl.u32 %v889, 7
    %v891 = vsub.s32 0, %v890
    %v892 = vrot.slane %v887, %v891
    %v894 = vpack.i.b16 %v885, %v885
    %v896 = vlaneseq
    %v897 = vshrl.u32 %v896, 7
    %v898 = vsub.s32 0, %v897
    %v899 = vrot.slane %v894, %v898
    %v900 = vadd.bf16 %v860, %v892
    %v901 = vadd.bf16 %v861, %v899
    %vm902 = vcmp.ge.bf16.partialorder %v900, 0
    %vm903 = vcmp.ge.bf16.partialorder %v901, 0
    %s904 = sshll.u32 %s144, 16
    %s905 = sor.u32 %s144, %s904
    %v906 = vstv %s905
    %v908 = vmul.bf16 %v906, %v900
    %v909 = vmul.bf16 %v906, %v901
    %v910 = vsel %vm902, %v900, %v908
    %v911 = vsel %vm903, %v901, %v909
    %v912 = vld [vmem:[#allocation8] sm:$0xf]
    %v913 = vld [vmem:[#allocation8 + $0x4] sm:$0xf]
    %v914 = vld [vmem:[#allocation8 + $0x8] sm:$0xf]
    %v915 = vld [vmem:[#allocation8 + $0xc] sm:$0xf]
    %v916 = vld [vmem:[#allocation8 + $0x10] sm:$0xf]
    %v917 = vld [vmem:[#allocation8 + $0x14] sm:$0xf]
    %v918 = vld [vmem:[#allocation8 + $0x18] sm:$0xf]
    %v919 = vld [vmem:[#allocation8 + $0x1c] sm:$0xf]
    %v920 = vld [vmem:[#allocation8 + $0x20] sm:$0xf]
    %v921 = vld [vmem:[#allocation8 + $0x24] sm:$0xf]
    %v922 = vld [vmem:[#allocation8 + $0x28] sm:$0xf]
    %v923 = vld [vmem:[#allocation8 + $0x2c] sm:$0xf]
    %v924 = vld [vmem:[#allocation8 + $0x30] sm:$0xf]
    %v925 = vld [vmem:[#allocation8 + $0x34] sm:$0xf]
    %v926 = vld [vmem:[#allocation8 + $0x38] sm:$0xf]
    %v927 = vld [vmem:[#allocation8 + $0x3c] sm:$0xf]
    %v928 = vld [vmem:[#allocation8 + $0x40] sm:$0xf]
    %v929 = vld [vmem:[#allocation8 + $0x44] sm:$0xf]
    %v930 = vld [vmem:[#allocation8 + $0x48] sm:$0xf]
    %v931 = vld [vmem:[#allocation8 + $0x4c] sm:$0xf]
    %v932 = vld [vmem:[#allocation8 + $0x50] sm:$0xf]
    %v933 = vld [vmem:[#allocation8 + $0x54] sm:$0xf]
    %v934 = vld [vmem:[#allocation8 + $0x58] sm:$0xf]
    %v935 = vld [vmem:[#allocation8 + $0x5c] sm:$0xf]
    %v936 = vld [vmem:[#allocation8 + $0x60] sm:$0xf]
    %v937 = vld [vmem:[#allocation8 + $0x64] sm:$0xf]
    %v938 = vld [vmem:[#allocation8 + $0x68] sm:$0xf]
    %v939 = vld [vmem:[#allocation8 + $0x6c] sm:$0xf]
    %v940 = vld [vmem:[#allocation8 + $0x70] sm:$0xf]
    %v941 = vld [vmem:[#allocation8 + $0x74] sm:$0xf]
    %v942 = vld [vmem:[#allocation8 + $0x78] sm:$0xf]
    %v943 = vld [vmem:[#allocation8 + $0x7c] sm:$0xf]
    %v976 = vunpack.c.l.b16 %v912
    %v977 = vunpack.c.l.b16 %v913
    %v978 = vunpack.c.l.b16 %v914
    %v979 = vunpack.c.l.b16 %v915
    %v980 = vunpack.c.l.b16 %v916
    %v981 = vunpack.c.l.b16 %v917
    %v982 = vunpack.c.l.b16 %v918
    %v983 = vunpack.c.l.b16 %v919
    %v984 = vunpack.c.l.b16 %v920
    %v985 = vunpack.c.l.b16 %v921
    %v986 = vunpack.c.l.b16 %v922
    %v987 = vunpack.c.l.b16 %v923
    %v988 = vunpack.c.l.b16 %v924
    %v989 = vunpack.c.l.b16 %v925
    %v990 = vunpack.c.l.b16 %v926
    %v991 = vunpack.c.l.b16 %v927
    %v992 = vunpack.c.l.b16 %v928
    %v993 = vunpack.c.l.b16 %v929
    %v994 = vunpack.c.l.b16 %v930
    %v995 = vunpack.c.l.b16 %v931
    %v996 = vunpack.c.l.b16 %v932
    %v997 = vunpack.c.l.b16 %v933
    %v998 = vunpack.c.l.b16 %v934
    %v999 = vunpack.c.l.b16 %v935
    %v1000 = vunpack.c.l.b16 %v936
    %v1001 = vunpack.c.l.b16 %v937
    %v1002 = vunpack.c.l.b16 %v938
    %v1003 = vunpack.c.l.b16 %v939
    %v1004 = vunpack.c.l.b16 %v940
    %v1005 = vunpack.c.l.b16 %v941
    %v1006 = vunpack.c.l.b16 %v942
    %v1007 = vunpack.c.l.b16 %v943
    %v1008 = vpack.c.b16 %v977, %v976
    %v1009 = vpack.c.b16 %v979, %v978
    %v1010 = vpack.c.b16 %v981, %v980
    %v1011 = vpack.c.b16 %v983, %v982
    %v1012 = vpack.c.b16 %v985, %v984
    %v1013 = vpack.c.b16 %v987, %v986
    %v1014 = vpack.c.b16 %v989, %v988
    %v1015 = vpack.c.b16 %v991, %v990
    %v1016 = vpack.c.b16 %v993, %v992
    %v1017 = vpack.c.b16 %v995, %v994
    %v1018 = vpack.c.b16 %v997, %v996
    %v1019 = vpack.c.b16 %v999, %v998
    %v1020 = vpack.c.b16 %v1001, %v1000
    %v1021 = vpack.c.b16 %v1003, %v1002
    %v1022 = vpack.c.b16 %v1005, %v1004
    %v1023 = vpack.c.b16 %v1007, %v1006
    %1040 = vmatprep.subr.bf16.mxu0 0
    %1041 = vmatpush1.bf16.msra.mxu0 %v1008
    %1042 = vmatprep.subr.bf16.mxu0 0
    %1043 = vmatpush1.bf16.msra.mxu0 %v1009
    %1044 = vmatprep.subr.bf16.mxu0 0
    %1045 = vmatpush1.bf16.msra.mxu0 %v1010
    %1046 = vmatprep.subr.bf16.mxu0 0
    %1047 = vmatpush1.bf16.msra.mxu0 %v1011
    %1048 = vmatprep.subr.bf16.mxu0 0
    %1049 = vmatpush1.bf16.msra.mxu0 %v1012
    %1050 = vmatprep.subr.bf16.mxu0 0
    %1051 = vmatpush1.bf16.msra.mxu0 %v1013
    %1052 = vmatprep.subr.bf16.mxu0 0
    %1053 = vmatpush1.bf16.msra.mxu0 %v1014
    %1054 = vmatprep.subr.bf16.mxu0 0
    %1055 = vmatpush1.bf16.msra.mxu0 %v1015
    %1056 = vmatprep.subr.bf16.mxu0 0
    %1057 = vmatpush1.bf16.msra.mxu0 %v1016
    %1058 = vmatprep.subr.bf16.mxu0 0
    %1059 = vmatpush1.bf16.msra.mxu0 %v1017
    %1060 = vmatprep.subr.bf16.mxu0 0
    %1061 = vmatpush1.bf16.msra.mxu0 %v1018
    %1062 = vmatprep.subr.bf16.mxu0 0
    %1063 = vmatpush1.bf16.msra.mxu0 %v1019
    %1064 = vmatprep.subr.bf16.mxu0 0
    %1065 = vmatpush1.bf16.msra.mxu0 %v1020
    %1066 = vmatprep.subr.bf16.mxu0 0
    %1067 = vmatpush1.bf16.msra.mxu0 %v1021
    %1068 = vmatprep.subr.bf16.mxu0 0
    %1069 = vmatpush1.bf16.msra.mxu0 %v1022
    %1070 = vmatprep.subr.bf16.mxu0 0
    %1071 = vmatpush1.bf16.msra.mxu0 %v1023
    %1072 = vmatprep.mubr.bf16.mxu0 %v911
    %1073 = vmatmul.mubr.bf16.gmra.mrb[0].mxu0 %v910
    %v1074 = vpop.f32.mrb[0].mxu0
    %v1075 = vadd.f32 0.0, %v1074
    %v1076 = vpop.f32.mrb[0].mxu0
    %v1077 = vpop.f32.mrb[0].mxu0
    %v1078 = vadd.f32 0.0, %v1077
    %v1079 = vpop.f32.mrb[0].mxu0
    %1080 = vdwg.mxu0
    %v1081 = vpack.c.bf16 %v1078, %v1075
    %v1082 = vld [vmem:[%s7] sm:$0x1]
    %v1084 = vpack.i.b16 %v1082, %v1082
    %v1086 = vlaneseq
    %v1087 = vshrl.u32 %v1086, 7
    %v1088 = vsub.s32 0, %v1087
    %v1089 = vrot.slane %v1084, %v1088
    %v1090 = vadd.bf16 %v1081, %v1089
    %vm1091 = vcmp.ge.bf16.partialorder %v1090, 0
    %s1092 = sshll.u32 %s155, 16
    %s1093 = sor.u32 %s155, %s1092
    %v1094 = vstv %s1093
    %v1096 = vmul.bf16 %v1094, %v1090
    %v1097 = vsel %vm1091, %v1090, %v1096
    %v1098 = vld [vmem:[#allocation9] sm:$0xf]
    %v1099 = vld [vmem:[#allocation9 + $0x4] sm:$0xf]
    %v1100 = vld [vmem:[#allocation9 + $0x8] sm:$0xf]
    %v1101 = vld [vmem:[#allocation9 + $0xc] sm:$0xf]
    %v1102 = vld [vmem:[#allocation9 + $0x10] sm:$0xf]
    %v1103 = vld [vmem:[#allocation9 + $0x14] sm:$0xf]
    %v1104 = vld [vmem:[#allocation9 + $0x18] sm:$0xf]
    %v1105 = vld [vmem:[#allocation9 + $0x1c] sm:$0xf]
    %v1106 = vld [vmem:[#allocation9 + $0x20] sm:$0xf]
    %v1107 = vld [vmem:[#allocation9 + $0x24] sm:$0xf]
    %v1108 = vld [vmem:[#allocation9 + $0x28] sm:$0xf]
    %v1109 = vld [vmem:[#allocation9 + $0x2c] sm:$0xf]
    %v1110 = vld [vmem:[#allocation9 + $0x30] sm:$0xf]
    %v1111 = vld [vmem:[#allocation9 + $0x34] sm:$0xf]
    %v1112 = vld [vmem:[#allocation9 + $0x38] sm:$0xf]
    %v1113 = vld [vmem:[#allocation9 + $0x3c] sm:$0xf]
    %v1130 = vunpack.c.l.b16 %v1098
    %v1131 = vunpack.c.l.b16 %v1099
    %v1132 = vunpack.c.l.b16 %v1100
    %v1133 = vunpack.c.l.b16 %v1101
    %v1134 = vunpack.c.l.b16 %v1102
    %v1135 = vunpack.c.l.b16 %v1103
    %v1136 = vunpack.c.l.b16 %v1104
    %v1137 = vunpack.c.l.b16 %v1105
    %v1138 = vunpack.c.l.b16 %v1106
    %v1139 = vunpack.c.l.b16 %v1107
    %v1140 = vunpack.c.l.b16 %v1108
    %v1141 = vunpack.c.l.b16 %v1109
    %v1142 = vunpack.c.l.b16 %v1110
    %v1143 = vunpack.c.l.b16 %v1111
    %v1144 = vunpack.c.l.b16 %v1112
    %v1145 = vunpack.c.l.b16 %v1113
    %v1146 = vpack.c.b16 %v1131, %v1130
    %v1147 = vpack.c.b16 %v1133, %v1132
    %v1148 = vpack.c.b16 %v1135, %v1134
    %v1149 = vpack.c.b16 %v1137, %v1136
    %v1150 = vpack.c.b16 %v1139, %v1138
    %v1151 = vpack.c.b16 %v1141, %v1140
    %v1152 = vpack.c.b16 %v1143, %v1142
    %v1153 = vpack.c.b16 %v1145, %v1144
    %1162 = vmatprep.subr.bf16.mxu0 0
    %1163 = vmatpush1.bf16.msra.mxu0 %v1146
    %1164 = vmatprep.subr.bf16.mxu0 0
    %1165 = vmatpush1.bf16.msra.mxu0 %v1147
    %1166 = vmatprep.subr.bf16.mxu0 0
    %1167 = vmatpush1.bf16.msra.mxu0 %v1148
    %1168 = vmatprep.subr.bf16.mxu0 0
    %1169 = vmatpush1.bf16.msra.mxu0 %v1149
    %1170 = vmatprep.subr.bf16.mxu0 0
    %1171 = vmatpush1.bf16.msra.mxu0 %v1150
    %1172 = vmatprep.subr.bf16.mxu0 0
    %1173 = vmatpush1.bf16.msra.mxu0 %v1151
    %1174 = vmatprep.subr.bf16.mxu0 0
    %1175 = vmatpush1.bf16.msra.mxu0 %v1152
    %1176 = vmatprep.subr.bf16.mxu0 0
    %1177 = vmatpush1.bf16.msra.mxu0 %v1153
    %1178 = vmatprep.subr.bf16.mxu0 0
    %1179 = vmatpush1.bf16.msra.mxu0 0
    %1180 = vmatprep.subr.bf16.mxu0 0
    %1181 = vmatpush1.bf16.msra.mxu0 0
    %1182 = vmatprep.subr.bf16.mxu0 0
    %1183 = vmatpush1.bf16.msra.mxu0 0
    %1184 = vmatprep.subr.bf16.mxu0 0
    %1185 = vmatpush1.bf16.msra.mxu0 0
    %1186 = vmatprep.subr.bf16.mxu0 0
    %1187 = vmatpush1.bf16.msra.mxu0 0
    %1188 = vmatprep.subr.bf16.mxu0 0
    %1189 = vmatpush1.bf16.msra.mxu0 0
    %1190 = vmatprep.subr.bf16.mxu0 0
    %1191 = vmatpush1.bf16.msra.mxu0 0
    %1192 = vmatprep.subr.bf16.mxu0 0
    %1193 = vmatpush1.bf16.msra.mxu0 0
    %1194 = vmatprep.mubr.bf16.mxu0 0
    %1195 = vmatmul.mubr.bf16.gmra.mrb[0].mxu0 %v1097
    %v1196 = vpop.f32.mrb[0].mxu0
    %v1197 = vadd.f32 0.0, %v1196
    %v1198 = vpop.f32.mrb[0].mxu0
    %v1199 = vpop.f32.mrb[0].mxu0
    %v1200 = vadd.f32 0.0, %v1199
    %v1201 = vpop.f32.mrb[0].mxu0
    %1202 = vdwg.mxu0
    %v1203 = vpack.c.bf16 %v1200, %v1197
    %v1204 = vld [vmem:[%s9] sm:$0x1]
    %v1206 = vpack.i.b16 %v1204, %v1204
    %v1208 = vlaneseq
    %v1209 = vshrl.u32 %v1208, 7
    %v1210 = vsub.s32 0, %v1209
    %v1211 = vrot.slane %v1206, %v1210
    %v1212 = vadd.bf16 %v1203, %v1211
    %vm1213 = vcmp.ge.bf16.partialorder %v1212, 0
    %s1214 = sshll.u32 %s166, 16
    %s1215 = sor.u32 %s166, %s1214
    %v1216 = vstv %s1215
    %v1218 = vmul.bf16 %v1216, %v1212
    %v1219 = vsel %vm1213, %v1212, %v1218
    %v1220 = vld [vmem:[#allocation11] sm:$0xf]
    %v1221 = vld [vmem:[#allocation11 + $0x4] sm:$0xf]
    %v1222 = vld [vmem:[#allocation11 + $0x8] sm:$0xf]
    %v1223 = vld [vmem:[#allocation11 + $0xc] sm:$0xf]
    %v1224 = vld [vmem:[#allocation11 + $0x10] sm:$0xf]
    %v1225 = vld [vmem:[#allocation11 + $0x14] sm:$0xf]
    %v1226 = vld [vmem:[#allocation11 + $0x18] sm:$0xf]
    %v1227 = vld [vmem:[#allocation11 + $0x1c] sm:$0xf]
    %v1228 = vld [vmem:[#allocation11 + $0x20] sm:$0xf]
    %v1229 = vld [vmem:[#allocation11 + $0x24] sm:$0xf]
    %v1230 = vld [vmem:[#allocation11 + $0x28] sm:$0xf]
    %v1231 = vld [vmem:[#allocation11 + $0x2c] sm:$0xf]
    %v1232 = vld [vmem:[#allocation11 + $0x30] sm:$0xf]
    %v1233 = vld [vmem:[#allocation11 + $0x34] sm:$0xf]
    %v1234 = vld [vmem:[#allocation11 + $0x38] sm:$0xf]
    %v1235 = vld [vmem:[#allocation11 + $0x3c] sm:$0xf]
    %v1236 = vld [vmem:[%s11] sm:$0x1]
    %v1238 = vlaneseq
    %v1239 = vshrl.u32 %v1238, 7
    %v1240 = vsub.s32 0, %v1239
    %v1241 = vrot.slane %v1236, %v1240
    %v1259 = vunpack.c.l.b16 %v1220
    %v1260 = vunpack.c.l.b16 %v1221
    %v1261 = vunpack.c.l.b16 %v1222
    %v1262 = vunpack.c.l.b16 %v1223
    %v1263 = vunpack.c.l.b16 %v1224
    %v1264 = vunpack.c.l.b16 %v1225
    %v1265 = vunpack.c.l.b16 %v1226
    %v1266 = vunpack.c.l.b16 %v1227
    %v1267 = vunpack.c.l.b16 %v1228
    %v1268 = vunpack.c.l.b16 %v1229
    %v1269 = vunpack.c.l.b16 %v1230
    %v1270 = vunpack.c.l.b16 %v1231
    %v1271 = vunpack.c.l.b16 %v1232
    %v1272 = vunpack.c.l.b16 %v1233
    %v1273 = vunpack.c.l.b16 %v1234
    %v1274 = vunpack.c.l.b16 %v1235
    %v1275 = vpack.c.b16 %v1260, %v1259
    %v1276 = vpack.c.b16 %v1262, %v1261
    %v1277 = vpack.c.b16 %v1264, %v1263
    %v1278 = vpack.c.b16 %v1266, %v1265
    %v1279 = vpack.c.b16 %v1268, %v1267
    %v1280 = vpack.c.b16 %v1270, %v1269
    %v1281 = vpack.c.b16 %v1272, %v1271
    %v1282 = vpack.c.b16 %v1274, %v1273
    %1291 = vmatprep.subr.bf16.mxu0 0
    %1292 = vmatpush1.bf16.msra.mxu0 %v1275
    %1293 = vmatprep.subr.bf16.mxu0 0
    %1294 = vmatpush1.bf16.msra.mxu0 %v1276
    %1295 = vmatprep.subr.bf16.mxu0 0
    %1296 = vmatpush1.bf16.msra.mxu0 %v1277
    %1297 = vmatprep.subr.bf16.mxu0 0
    %1298 = vmatpush1.bf16.msra.mxu0 %v1278
    %1299 = vmatprep.subr.bf16.mxu0 0
    %1300 = vmatpush1.bf16.msra.mxu0 %v1279
    %1301 = vmatprep.subr.bf16.mxu0 0
    %1302 = vmatpush1.bf16.msra.mxu0 %v1280
    %1303 = vmatprep.subr.bf16.mxu0 0
    %1304 = vmatpush1.bf16.msra.mxu0 %v1281
    %1305 = vmatprep.subr.bf16.mxu0 0
    %1306 = vmatpush1.bf16.msra.mxu0 %v1282
    %1307 = vmatprep.subr.bf16.mxu0 0
    %1308 = vmatpush1.bf16.msra.mxu0 0
    %1309 = vmatprep.subr.bf16.mxu0 0
    %1310 = vmatpush1.bf16.msra.mxu0 0
    %1311 = vmatprep.subr.bf16.mxu0 0
    %1312 = vmatpush1.bf16.msra.mxu0 0
    %1313 = vmatprep.subr.bf16.mxu0 0
    %1314 = vmatpush1.bf16.msra.mxu0 0
    %1315 = vmatprep.subr.bf16.mxu0 0
    %1316 = vmatpush1.bf16.msra.mxu0 0
    %1317 = vmatprep.subr.bf16.mxu0 0
    %1318 = vmatpush1.bf16.msra.mxu0 0
    %1319 = vmatprep.subr.bf16.mxu0 0
    %1320 = vmatpush1.bf16.msra.mxu0 0
    %1321 = vmatprep.subr.bf16.mxu0 0
    %1322 = vmatpush1.bf16.msra.mxu0 0
    %1323 = vmatprep.mubr.bf16.mxu0 0
    %1324 = vmatmul.mubr.bf16.gmra.mrb[0].mxu0 %v1219
    %v1325 = vpop.f32.mrb[0].mxu0
    %v1326 = vadd.f32 %v1241, %v1325
    %v1327 = vpop.f32.mrb[0].mxu0
    %v1328 = vpop.f32.mrb[0].mxu0
    %v1329 = vadd.f32 %v1241, %v1328
    %v1330 = vpop.f32.mrb[0].mxu0
    %1331 = vdwg.mxu0
    %v1332 = vpack.c.bf16 %v1329, %v1326
    %v1334 = vunpack.c.l.b16 %v1332
    %v1335 = vunpack.c.h.b16 %v1332
    %v1336 = vpack.c.b16 %v1334, %v1334
    %v1337 = vpack.c.b16 %v1335, %v1335
    %1340 = vst [vmem:[%s12] sm:$0xf] %v1336
    %1341 = vst [vmem:[%s12 + $0x4] sm:$0xf] %v1337
    // Predicated region
    $region74: #{mlp_forward.1} parent=1 // pred_check
      _
    $region75: #{mlp_forward.1} parent=1 // pred_check_branch
      %1343 = sbr.rel (0) target = $region77
    $region76: #{mlp_forward.1} parent=1 // pred_region
      _
    $region77: #{mlp_forward.1} parent=1 // pred_fallthru
      _
    // Predicated region
    $region78: #{mlp_forward.1} parent=1 // pred_check
      _
    $region79: #{mlp_forward.1} parent=1 // pred_check_branch
      %1345 = sbr.rel (0) target = $region81
    $region80: #{mlp_forward.1} parent=1 // pred_region
      _
    $region81: #{mlp_forward.1} parent=1 // pred_fallthru
      _
    %1346 = vsyncpa [#allocation3], 1
    %1347 = vsyncpa [#allocation7], 1
    %1348 = vsyncpa [#allocation10], 1
    %1349 = vsyncpa [#allocation4], 1

</llo_original>
